<compile_context>
chip_gen: v7x
topology: tpu7x:2x2x1
jax: 0.10.0
libtpu: 0.0.40
codegen_flags: <defaults>
</compile_context>

<pallas_src>
import functools

import jax
import jax.numpy as jnp
from jax.experimental import pallas as pl
from jax.experimental.pallas import tpu as pltpu


# --------------------------------------------------------------------------- #
# Kernels
# --------------------------------------------------------------------------- #
def _hinge_partial_kernel(true_batch,
                          margin_ref,            # SMEM (1,) f32
                          h_ref, t_ref, r_ref, n_ref,   # VMEM (2, TB, D)
                          out_ref):              # VMEM (1, 8, 128)
    # F.normalize(x, p=2, dim=1) == x / max(||x||, 1e-12)
    #                            == x * rsqrt(max(||x||^2, 1e-24))
    eps_sq = 1e-24

    h = h_ref[...].astype(jnp.float32)   # (2, TB, D)  [0]=pos rows, [1]=neg rows
    t = t_ref[...].astype(jnp.float32)
    r = r_ref[...].astype(jnp.float32)
    n = n_ref[...].astype(jnp.float32)

    # Hoisted: normalize the hyperplane normal ONCE, reuse for head & tail.
    n_sq = jnp.sum(n * n, axis=-1, keepdims=True)                    # (2, TB, 1)
    n_hat = n * jax.lax.rsqrt(jnp.maximum(n_sq, eps_sq))             # EUP rsqrt

    h_perp = h - jnp.sum(h * n_hat, axis=-1, keepdims=True) * n_hat
    t_perp = t - jnp.sum(t * n_hat, axis=-1, keepdims=True) * n_hat

    diff = h_perp + r - t_perp                                        # (2, TB, D)
    score = jnp.sqrt(jnp.sum(diff * diff, axis=-1, keepdims=True))    # (2, TB, 1)

    pos_score = score[0]                                              # (TB, 1)
    neg_score = score[1]
    hinge = jnp.maximum(margin_ref[0] + pos_score - neg_score, 0.0)

    # Mask out padded batch rows of the last tile.
    tb = h_ref.shape[1]
    row = (pl.program_id(0) * tb
           + jax.lax.broadcasted_iota(jnp.int32, (tb, 1), 0))
    hinge = jnp.where(row < true_batch, hinge, 0.0)

    out_ref[...] = jnp.full(out_ref.shape, jnp.sum(hinge), dtype=jnp.float32)


def _orth_partial_kernel(num_relations,
                         rel_ref, nrm_ref,       # VMEM (TR, D)
                         out_ref):               # VMEM (1, 8, 128)
    r = rel_ref[...].astype(jnp.float32)
    w = nrm_ref[...].astype(jnp.float32)

    dots = jnp.sum(r * w, axis=-1, keepdims=True)                    # (TR, 1)
    r_sq = jnp.sum(r * r, axis=-1, keepdims=True)
    w_sq = jnp.sum(w * w, axis=-1, keepdims=True)
    # |<r,w>| / (||r|| * ||w||) via a single EUP rsqrt (no sqrt/divide on VPU).
    cosine = jnp.abs(dots) * jax.lax.rsqrt(r_sq * w_sq)

    # Mask out padded relation rows.
    tr = rel_ref.shape[0]
    row = (pl.program_id(0) * tr
           + jax.lax.broadcasted_iota(jnp.int32, (tr, 1), 0))
    cosine = jnp.where(row < num_relations, cosine, 0.0)

    out_ref[...] = jnp.full(out_ref.shape, jnp.sum(cosine), dtype=jnp.float32)


# --------------------------------------------------------------------------- #
# Wrapper
# --------------------------------------------------------------------------- #
def _round_up(x, m):
    return ((x + m - 1) // m) * m


def _pick_batch_tile(batch, dim, budget_bytes=20 * 1024 * 1024):
    # 4 slabs x 2 rows (pos+neg) x double-buffer(2) x tile_B x D x 4B must fit
    # in the (conservative, v7x-safe) VMEM input budget.
    per_row = 4 * 2 * 2 * dim * 4
    tile = max(8, (budget_bytes // per_row) // 8 * 8)
    tile = min(tile, 2048)
    tile = min(tile, _round_up(batch, 8))
    return max(tile, 8)


def _pick_rel_tile(num_rel, dim, budget_bytes=8 * 1024 * 1024):
    per_row = 2 * 2 * dim * 4
    tile = max(8, (budget_bytes // per_row) // 8 * 8)
    tile = min(tile, 1024)
    tile = min(tile, _round_up(num_rel, 8))
    return max(tile, 8)


def transh_forward(entity_emb, relation_emb, normal_vec,
                   pos_h, pos_r, pos_t, neg_h, neg_r, neg_t,
                   margin=1.0, C=0.1):
    B = pos_h.shape[0]
    R, D = relation_emb.shape

    # ---- embedding gathers (XLA glue; see TODO at top of file) ---- #
    ph = jnp.take(entity_emb, pos_h, axis=0)
    pt = jnp.take(entity_emb, pos_t, axis=0)
    pr = jnp.take(relation_emb, pos_r, axis=0)
    pn = jnp.take(normal_vec, pos_r, axis=0)
    nh = jnp.take(entity_emb, neg_h, axis=0)
    nt = jnp.take(entity_emb, neg_t, axis=0)
    nr = jnp.take(relation_emb, neg_r, axis=0)
    nn = jnp.take(normal_vec, neg_r, axis=0)

    # Stack pos/neg into paired slabs: halves distinct DMAs and vector ops.
    h_slab = jnp.stack([ph, nh], axis=0)   # (2, B, D)
    t_slab = jnp.stack([pt, nt], axis=0)
    r_slab = jnp.stack([pr, nr], axis=0)
    n_slab = jnp.stack([pn, nn], axis=0)

    # ---- hinge loss: batch-tiled grid, per-tile partial sums ---- #
    tile_b = _pick_batch_tile(B, D)
    b_pad = _round_up(B, tile_b)
    if b_pad != B:
        padcfg = ((0, 0), (0, b_pad - B), (0, 0))
        h_slab = jnp.pad(h_slab, padcfg)
        t_slab = jnp.pad(t_slab, padcfg)
        r_slab = jnp.pad(r_slab, padcfg)
        n_slab = jnp.pad(n_slab, padcfg)
    n_b_tiles = b_pad // tile_b

    margin_arr = jnp.asarray([margin], dtype=jnp.float32)
    slab_spec = pl.BlockSpec((2, tile_b, D), lambda i: (0, i, 0))

    hinge_partials = pl.pallas_call(
        functools.partial(_hinge_partial_kernel, B),
        out_shape=jax.ShapeDtypeStruct((n_b_tiles, 8, 128), jnp.float32),
        grid_spec=pltpu.PrefetchScalarGridSpec(
            num_scalar_prefetch=0,
            grid=(n_b_tiles,),
            in_specs=[pl.BlockSpec(memory_space=pltpu.MemorySpace.SMEM),
                      slab_spec, slab_spec, slab_spec, slab_spec],
            out_specs=pl.BlockSpec((1, 8, 128), lambda i: (i, 0, 0))),
        compiler_params=pltpu.CompilerParams(
            dimension_semantics=("parallel",),
            vmem_limit_bytes=32 * 1024 * 1024),
        cost_estimate=pl.CostEstimate(
            flops=int(30 * B * D),
            transcendentals=int(4 * B),
            bytes_accessed=int(8 * B * D * 4 + n_b_tiles * 8 * 128 * 4)),
    )(margin_arr, h_slab, t_slab, r_slab, n_slab)
    hinge_sum = jnp.sum(hinge_partials[:, 0, 0])

    # ---- orthogonality constraint: batch-independent, separate small call --- #
    tile_r = _pick_rel_tile(R, D)
    r_pad = _round_up(R, tile_r)
    rel_w = relation_emb
    nrm_w = normal_vec
    if r_pad != R:
        padcfg = ((0, r_pad - R), (0, 0))
        rel_w = jnp.pad(rel_w, padcfg)
        nrm_w = jnp.pad(nrm_w, padcfg)
    n_r_tiles = r_pad // tile_r

    tbl_spec = pl.BlockSpec((tile_r, D), lambda i: (i, 0))
    orth_partials = pl.pallas_call(
        functools.partial(_orth_partial_kernel, R),
        out_shape=jax.ShapeDtypeStruct((n_r_tiles, 8, 128), jnp.float32),
        grid_spec=pltpu.PrefetchScalarGridSpec(
            num_scalar_prefetch=0,
            grid=(n_r_tiles,),
            in_specs=[tbl_spec, tbl_spec],
            out_specs=pl.BlockSpec((1, 8, 128), lambda i: (i, 0, 0))),
        compiler_params=pltpu.CompilerParams(
            dimension_semantics=("parallel",),
            vmem_limit_bytes=32 * 1024 * 1024),
        cost_estimate=pl.CostEstimate(
            flops=int(6 * R * D),
            transcendentals=int(R),
            bytes_accessed=int(2 * R * D * 4 + n_r_tiles * 8 * 128 * 4)),
    )(rel_w, nrm_w)
    orth_sum = jnp.sum(orth_partials[:, 0, 0])

    return hinge_sum / B + C * orth_sum


# --------------------------------------------------------------------------- #
# Reference + test
# --------------------------------------------------------------------------- #
def _xavier_uniform(key, shape, dtype=jnp.float32):
    fan_in, fan_out = shape[0], shape[1]
    bound = jnp.sqrt(6.0 / (fan_in + fan_out))
    return jax.random.uniform(key, shape, dtype, minval=-bound, maxval=bound)


def _reference_forward(entity_emb, relation_emb, normal_vec,
                       pos_h, pos_r, pos_t, neg_h, neg_r, neg_t,
                       margin=1.0, C=0.1):
    def normalize(x):
        n = jnp.linalg.norm(x, axis=1, keepdims=True)
        return x / jnp.maximum(n, 1e-12)

    def transfer(e, norm):
        nrm = normalize(norm)
        return e - jnp.sum(e * nrm, axis=1, keepdims=True) * nrm

    ph = entity_emb[pos_h]; pt = entity_emb[pos_t]
    pr = relation_emb[pos_r]; pn = normal_vec[pos_r]
    nh = entity_emb[neg_h]; nt = entity_emb[neg_t]
    nr = relation_emb[neg_r]; nn = normal_vec[neg_r]

    pos_score = jnp.linalg.norm(transfer(ph, pn) + pr - transfer(pt, pn), axis=1)
    neg_score = jnp.linalg.norm(transfer(nh, nn) + nr - transfer(nt, nn), axis=1)
    basic = jnp.mean(jnp.maximum(margin + pos_score - neg_score, 0.0))
    r_n = jnp.linalg.norm(relation_emb, axis=1)
    w_n = jnp.linalg.norm(normal_vec, axis=1)
    orth = jnp.sum(jnp.abs(jnp.sum(relation_emb * normal_vec, axis=1) / (r_n * w_n)))
    return basic + C * orth


if __name__ == "__main__":
    num_entities = 32
    num_relations = 8
    embedding_dim = 32
    batch = 8
    margin = 1.0
    C = 0.1

    key = jax.random.PRNGKey(0)
    k_ent, k_rel, k_nrm, k_idx = jax.random.split(key, 4)

    entity_emb = _xavier_uniform(k_ent, (num_entities, embedding_dim))
    # match the module: entity embeddings are L2-row-normalized at init
    entity_emb = entity_emb / jnp.maximum(
        jnp.linalg.norm(entity_emb, axis=1, keepdims=True), 1e-12)
    relation_emb = _xavier_uniform(k_rel, (num_relations, embedding_dim))
    normal_vec = _xavier_uniform(k_nrm, (num_relations, embedding_dim))

    k1, k2, k3, k4, k5, k6 = jax.random.split(k_idx, 6)
    pos_h = jax.random.randint(k1, (batch,), 0, num_entities)
    pos_r = jax.random.randint(k2, (batch,), 0, num_relations)
    pos_t = jax.random.randint(k3, (batch,), 0, num_entities)
    neg_h = jax.random.randint(k4, (batch,), 0, num_entities)
    neg_r = jax.random.randint(k5, (batch,), 0, num_relations)
    neg_t = jax.random.randint(k6, (batch,), 0, num_entities)

    loss = transh_forward(entity_emb, relation_emb, normal_vec,
                          pos_h, pos_r, pos_t, neg_h, neg_r, neg_t,
                          margin=margin, C=C)
    loss = jax.block_until_ready(loss)

    ref = _reference_forward(entity_emb, relation_emb, normal_vec,
                             pos_h, pos_r, pos_t, neg_h, neg_r, neg_t,
                             margin=margin, C=C)
    assert jnp.allclose(loss, ref, rtol=1e-5, atol=1e-5), (loss, ref)

    print("KERNEL_OK")
</pallas_src>

<mosaic_0001>
module attributes {stable_mosaic.version = 11 : i64} {
  func.func @_hinge_partial_kernel(%arg0: i32, %arg1: memref<1xf32, #tpu.memory_space<smem>>, %arg2: memref<2x8x32xf32, #tpu.memory_space<vmem>>, %arg3: memref<2x8x32xf32, #tpu.memory_space<vmem>>, %arg4: memref<2x8x32xf32, #tpu.memory_space<vmem>>, %arg5: memref<2x8x32xf32, #tpu.memory_space<vmem>>, %arg6: memref<1x8x128xf32, #tpu.memory_space<vmem>>) attributes {dimension_semantics = [#tpu.dimension_semantics<parallel>], iteration_bounds = array<i64: 1>, scalar_prefetch = 0 : i64, scratch_operands = 0 : i64, tpu.core_type = #tpu.core_type<tc>, window_params = [{transform_indices = @transform_0, window_bounds = array<i64: 1>}, {transform_indices = @transform_1, window_bounds = array<i64: 2, 8, 32>}, {transform_indices = @transform_2, window_bounds = array<i64: 2, 8, 32>}, {transform_indices = @transform_3, window_bounds = array<i64: 2, 8, 32>}, {transform_indices = @transform_4, window_bounds = array<i64: 2, 8, 32>}, {transform_indices = @transform_5, window_bounds = array<i64: 1, 8, 128>}]} {
    %c0 = arith.constant 0 : index
    %c0_0 = arith.constant 0 : index
    %c0_1 = arith.constant 0 : index
    %0 = vector.load %arg2[%c0, %c0_0, %c0_1] : memref<2x8x32xf32, #tpu.memory_space<vmem>>, vector<2x8x32xf32>
    %c0_2 = arith.constant 0 : index
    %c0_3 = arith.constant 0 : index
    %c0_4 = arith.constant 0 : index
    %1 = vector.load %arg3[%c0_2, %c0_3, %c0_4] : memref<2x8x32xf32, #tpu.memory_space<vmem>>, vector<2x8x32xf32>
    %c0_5 = arith.constant 0 : index
    %c0_6 = arith.constant 0 : index
    %c0_7 = arith.constant 0 : index
    %2 = vector.load %arg4[%c0_5, %c0_6, %c0_7] : memref<2x8x32xf32, #tpu.memory_space<vmem>>, vector<2x8x32xf32>
    %c0_8 = arith.constant 0 : index
    %c0_9 = arith.constant 0 : index
    %c0_10 = arith.constant 0 : index
    %3 = vector.load %arg5[%c0_8, %c0_9, %c0_10] : memref<2x8x32xf32, #tpu.memory_space<vmem>>, vector<2x8x32xf32>
    %4 = arith.mulf %3, %3 : vector<2x8x32xf32>
    %cst = arith.constant dense<0.000000e+00> : vector<2x8xf32>
    %5 = vector.multi_reduction <add>, %4, %cst [2] : vector<2x8x32xf32> to vector<2x8xf32>
    %6 = vector.shape_cast %5 : vector<2x8xf32> to vector<2x8x1xf32>
    %cst_11 = arith.constant 1.000000e-24 : f32
    %7 = vector.broadcast %cst_11 : f32 to vector<2x8x1xf32>
    %8 = arith.maximumf %6, %7 : vector<2x8x1xf32>
    %9 = math.rsqrt %8 : vector<2x8x1xf32>
    %10 = vector.broadcast %9 : vector<2x8x1xf32> to vector<2x8x32xf32>
    %11 = arith.mulf %3, %10 : vector<2x8x32xf32>
    %12 = arith.mulf %0, %11 : vector<2x8x32xf32>
    %cst_12 = arith.constant dense<0.000000e+00> : vector<2x8xf32>
    %13 = vector.multi_reduction <add>, %12, %cst_12 [2] : vector<2x8x32xf32> to vector<2x8xf32>
    %14 = vector.shape_cast %13 : vector<2x8xf32> to vector<2x8x1xf32>
    %15 = vector.broadcast %14 : vector<2x8x1xf32> to vector<2x8x32xf32>
    %16 = arith.mulf %15, %11 : vector<2x8x32xf32>
    %17 = arith.subf %0, %16 : vector<2x8x32xf32>
    %18 = arith.mulf %1, %11 : vector<2x8x32xf32>
    %cst_13 = arith.constant dense<0.000000e+00> : vector<2x8xf32>
    %19 = vector.multi_reduction <add>, %18, %cst_13 [2] : vector<2x8x32xf32> to vector<2x8xf32>
    %20 = vector.shape_cast %19 : vector<2x8xf32> to vector<2x8x1xf32>
    %21 = vector.broadcast %20 : vector<2x8x1xf32> to vector<2x8x32xf32>
    %22 = arith.mulf %21, %11 : vector<2x8x32xf32>
    %23 = arith.subf %1, %22 : vector<2x8x32xf32>
    %24 = arith.addf %17, %2 : vector<2x8x32xf32>
    %25 = arith.subf %24, %23 : vector<2x8x32xf32>
    %26 = arith.mulf %25, %25 : vector<2x8x32xf32>
    %cst_14 = arith.constant dense<0.000000e+00> : vector<2x8xf32>
    %27 = vector.multi_reduction <add>, %26, %cst_14 [2] : vector<2x8x32xf32> to vector<2x8xf32>
    %28 = vector.shape_cast %27 : vector<2x8xf32> to vector<2x8x1xf32>
    %29 = math.sqrt %28 : vector<2x8x1xf32>
    %30 = vector.extract_strided_slice %29 {offsets = [0, 0, 0], sizes = [1, 8, 1], strides = [1, 1, 1]} : vector<2x8x1xf32> to vector<1x8x1xf32>
    %31 = vector.shape_cast %30 : vector<1x8x1xf32> to vector<8x1xf32>
    %32 = vector.extract_strided_slice %29 {offsets = [1, 0, 0], sizes = [1, 8, 1], strides = [1, 1, 1]} : vector<2x8x1xf32> to vector<1x8x1xf32>
    %33 = vector.shape_cast %32 : vector<1x8x1xf32> to vector<8x1xf32>
    %c0_15 = arith.constant 0 : index
    %34 = memref.load %arg1[%c0_15] : memref<1xf32, #tpu.memory_space<smem>>
    %35 = vector.broadcast %34 : f32 to vector<8x1xf32>
    %36 = arith.addf %35, %31 : vector<8x1xf32>
    %37 = arith.subf %36, %33 : vector<8x1xf32>
    %cst_16 = arith.constant 0.000000e+00 : f32
    %38 = vector.broadcast %cst_16 : f32 to vector<8x1xf32>
    %39 = arith.maximumf %37, %38 : vector<8x1xf32>
    %c8_i32 = arith.constant 8 : i32
    %40 = arith.muli %arg0, %c8_i32 : i32
    %41 = tpu.iota {dimensions = array<i32: 0>} : vector<8x1xi32>
    %42 = vector.broadcast %40 : i32 to vector<8x1xi32>
    %43 = arith.addi %42, %41 : vector<8x1xi32>
    %c8_i32_17 = arith.constant 8 : i32
    %44 = vector.broadcast %c8_i32_17 : i32 to vector<8x1xi32>
    %45 = arith.cmpi slt, %43, %44 : vector<8x1xi32>
    %cst_18 = arith.constant 0.000000e+00 : f32
    %46 = vector.broadcast %cst_18 : f32 to vector<8x1xf32>
    %47 = arith.select %45, %39, %46 : vector<8x1xi1>, vector<8x1xf32>
    %48 = vector.shape_cast %47 : vector<8x1xf32> to vector<1x8x1xf32>
    %cst_19 = arith.constant dense<0.000000e+00> : vector<1xf32>
    %49 = vector.multi_reduction <add>, %48, %cst_19 [1, 2] : vector<1x8x1xf32> to vector<1xf32>
    %50 = vector.shape_cast %49 : vector<1xf32> to vector<1x1x1xf32>
    %51 = vector.extract %50[0, 0, 0] : f32 from vector<1x1x1xf32>
    %52 = vector.broadcast %51 : f32 to vector<1x8x128xf32>
    %c0_20 = arith.constant 0 : index
    %c0_21 = arith.constant 0 : index
    %c0_22 = arith.constant 0 : index
    %53 = vector.load %arg6[%c0_20, %c0_21, %c0_22] : memref<1x8x128xf32, #tpu.memory_space<vmem>>, vector<1x8x128xf32>
    tpu.vector_store %arg6[%c0_20, %c0_21, %c0_22], %52 {strides = array<i32>} : memref<1x8x128xf32, #tpu.memory_space<vmem>>, vector<1x8x128xf32>,
    return
  }
  func.func @transform_0(%arg0: i32) -> i32 {
    %c0_i32 = arith.constant 0 : i32
    %c0_i32_0 = arith.constant 0 : i32
    return %c0_i32 : i32
  }
  func.func @transform_1(%arg0: i32) -> (i32, i32, i32) {
    %c0_i32 = arith.constant 0 : i32
    %c0_i32_0 = arith.constant 0 : i32
    %c0_i32_1 = arith.constant 0 : i32
    return %c0_i32, %arg0, %c0_i32_0 : i32, i32, i32
  }
  func.func @transform_2(%arg0: i32) -> (i32, i32, i32) {
    %c0_i32 = arith.constant 0 : i32
    %c0_i32_0 = arith.constant 0 : i32
    %c0_i32_1 = arith.constant 0 : i32
    return %c0_i32, %arg0, %c0_i32_0 : i32, i32, i32
  }
  func.func @transform_3(%arg0: i32) -> (i32, i32, i32) {
    %c0_i32 = arith.constant 0 : i32
    %c0_i32_0 = arith.constant 0 : i32
    %c0_i32_1 = arith.constant 0 : i32
    return %c0_i32, %arg0, %c0_i32_0 : i32, i32, i32
  }
  func.func @transform_4(%arg0: i32) -> (i32, i32, i32) {
    %c0_i32 = arith.constant 0 : i32
    %c0_i32_0 = arith.constant 0 : i32
    %c0_i32_1 = arith.constant 0 : i32
    return %c0_i32, %arg0, %c0_i32_0 : i32, i32, i32
  }
  func.func @transform_5(%arg0: i32) -> (i32, i32, i32) {
    %c0_i32 = arith.constant 0 : i32
    %c0_i32_0 = arith.constant 0 : i32
    %c0_i32_1 = arith.constant 0 : i32
    return %arg0, %c0_i32, %c0_i32_0 : i32, i32, i32
  }
}

</mosaic_0001>

<llo_original>
// kernel: tpu_custom_call.1
$region0: #{tpu_custom_call.1}
  #allocation0 [shape = 'u32[]', space=smem, size = 0x4, offset = 0x4, fixed_abs, tag = 'smem constant byte address 0x4 - core index']
  #allocation1 [shape = 'u32[144,128]{1,0:T(1,128)}', space=vmem, size = 0x12000, scoped, tag = 'internal scratch']
  #allocation2 [shape = 'f32[1]{0:T(128)S(6)}', space=smem, size = 0x200, scoped, tag = 'scoped memory for tpu_custom_call.1']
  %s0 = inlined_call_operand.<no memory space> [shape: f32[1], index: 0, kind: input, shape index: {}]
  %s1 = inlined_call_operand.hbm [shape: f32[2,8,32], index: 1, kind: input, shape index: {}]
  %s2 = inlined_call_operand.hbm [shape: f32[2,8,32], index: 2, kind: input, shape index: {}]
  %s3 = inlined_call_operand.hbm [shape: f32[2,8,32], index: 3, kind: input, shape index: {}]
  %s4 = inlined_call_operand.hbm [shape: f32[2,8,32], index: 4, kind: input, shape index: {}]
  %s5 = inlined_call_operand.hbm [shape: f32[1,8,128], index: 5, kind: output, shape index: {}]
  %s6 = sld [smem:[#allocation0]]
  $region46: #{tpu_custom_call.1} parent=0
    _
  %s8 = ssub.s32 1, %s6
  %s9 = scalar_select 0, %s8, %s6
  %10 = sst [smem:[#allocation2]] %s0
  $region1: #{tpu_custom_call.1} parent=0
    #allocation3 [shape = 'u8[8192]{0}', space=vmem, size = 0x2000, scoped, tag = 'input window, operand 1, single buffered']
    #allocation4 [shape = 's32[1]{0}', space=sflag, size = 0x4, scoped, tag = 'scoped memory for tpu_custom_call.1']
    #allocation5 [shape = 's32[1]{0}', space=sflag, size = 0x4, scoped, tag = 'scoped memory for tpu_custom_call.1']
    #allocation6 [shape = 'u8[8192]{0}', space=vmem, size = 0x2000, scoped, tag = 'input window, operand 2, single buffered']
    #allocation7 [shape = 's32[1]{0}', space=sflag, size = 0x4, scoped, tag = 'scoped memory for tpu_custom_call.1']
    #allocation8 [shape = 'u8[8192]{0}', space=vmem, size = 0x2000, scoped, tag = 'input window, operand 3, single buffered']
    #allocation9 [shape = 'u8[8192]{0}', space=vmem, size = 0x2000, scoped, tag = 'input window, operand 4, single buffered']
    #allocation10 [shape = 's32[1]{0}', space=sflag, size = 0x4, scoped, tag = 'scoped memory for tpu_custom_call.1']
    #allocation11 [shape = 'u8[4096]{0}', space=vmem, size = 0x1000, scoped, tag = 'output window, operand 0, single buffered']
    %11 = vsyncpa [#allocation4], 0
    %12 = vsyncpa [#allocation7], 0
    %13 = vsyncpa [#allocation10], 0
    %14 = vsyncpa [#allocation5], 0
    // Predicated region
    $region2: #{tpu_custom_call.1} parent=1 // pred_check
      _
    $region3: #{tpu_custom_call.1} parent=1 // pred_check_branch
      %16 = sbr.rel (0) target = $region5
    $region4: #{tpu_custom_call.1} parent=1 // pred_region
      _
    $region5: #{tpu_custom_call.1} parent=1 // pred_fallthru
      _
    // Predicated region
    $region6: #{tpu_custom_call.1} parent=1 // pred_check
      _
    $region7: #{tpu_custom_call.1} parent=1 // pred_check_branch
      %18 = sbr.rel (0) target = $region9
    $region8: #{tpu_custom_call.1} parent=1 // pred_region
      %s20 = ssub.s32 256, 256
      %21 = vsyncadd [#allocation4], %s20
      %s22 = sshll.u32 [#allocation3], 4
      %s23 = int_to_ptr.vmem [resolvable:$true] %s22
      %28 = dma.hbm_to_vmem [thread:$0]  %s1, 256, %s23, [#allocation4], 128, 128, 8
    $region9: #{tpu_custom_call.1} parent=1 // pred_fallthru
      _
    // Predicated region
    $region10: #{tpu_custom_call.1} parent=1 // pred_check
      _
    $region11: #{tpu_custom_call.1} parent=1 // pred_check_branch
      %30 = sbr.rel (0) target = $region13
    $region12: #{tpu_custom_call.1} parent=1 // pred_region
      %s32 = ssub.s32 256, 256
      %33 = vsyncadd [#allocation7], %s32
      %s34 = sshll.u32 [#allocation6], 4
      %s35 = int_to_ptr.vmem [resolvable:$true] %s34
      %40 = dma.hbm_to_vmem [thread:$0]  %s2, 256, %s35, [#allocation7], 128, 128, 8
    $region13: #{tpu_custom_call.1} parent=1 // pred_fallthru
      _
    // Predicated region
    $region14: #{tpu_custom_call.1} parent=1 // pred_check
      _
    $region15: #{tpu_custom_call.1} parent=1 // pred_check_branch
      %42 = sbr.rel (0) target = $region17
    $region16: #{tpu_custom_call.1} parent=1 // pred_region
      %s44 = ssub.s32 256, 256
      %45 = vsyncadd [#allocation7], %s44
      %s46 = sshll.u32 [#allocation8], 4
      %s47 = int_to_ptr.vmem [resolvable:$true] %s46
      %52 = dma.hbm_to_vmem [thread:$0]  %s3, 256, %s47, [#allocation7], 128, 128, 8
    $region17: #{tpu_custom_call.1} parent=1 // pred_fallthru
      _
    // Predicated region
    $region18: #{tpu_custom_call.1} parent=1 // pred_check
      _
    $region19: #{tpu_custom_call.1} parent=1 // pred_check_branch
      %54 = sbr.rel (0) target = $region21
    $region20: #{tpu_custom_call.1} parent=1 // pred_region
      %s56 = ssub.s32 256, 256
      %57 = vsyncadd [#allocation10], %s56
      %s58 = sshll.u32 [#allocation9], 4
      %s59 = int_to_ptr.vmem [resolvable:$true] %s58
      %64 = dma.hbm_to_vmem [thread:$0]  %s4, 256, %s59, [#allocation10], 128, 128, 8
    $region21: #{tpu_custom_call.1} parent=1 // pred_fallthru
      _
    // Predicated region
    $region22: #{tpu_custom_call.1} parent=1 // pred_check
      _
    $region23: #{tpu_custom_call.1} parent=1 // pred_check_branch
      %66 = sbr.rel (0) target = $region25
    $region24: #{tpu_custom_call.1} parent=1 // pred_region
      %67 = dma.done [#allocation4], 256
    $region25: #{tpu_custom_call.1} parent=1 // pred_fallthru
      _
    // Predicated region
    $region26: #{tpu_custom_call.1} parent=1 // pred_check
      _
    $region27: #{tpu_custom_call.1} parent=1 // pred_check_branch
      %69 = sbr.rel (0) target = $region29
    $region28: #{tpu_custom_call.1} parent=1 // pred_region
      %70 = dma.done [#allocation7], 256
    $region29: #{tpu_custom_call.1} parent=1 // pred_fallthru
      _
    // Predicated region
    $region30: #{tpu_custom_call.1} parent=1 // pred_check
      _
    $region31: #{tpu_custom_call.1} parent=1 // pred_check_branch
      %72 = sbr.rel (0) target = $region33
    $region32: #{tpu_custom_call.1} parent=1 // pred_region
      %73 = dma.done [#allocation7], 256
    $region33: #{tpu_custom_call.1} parent=1 // pred_fallthru
      _
    // Predicated region
    $region34: #{tpu_custom_call.1} parent=1 // pred_check
      _
    $region35: #{tpu_custom_call.1} parent=1 // pred_check_branch
      %75 = sbr.rel (0) target = $region37
    $region36: #{tpu_custom_call.1} parent=1 // pred_region
      %76 = dma.done [#allocation10], 256
    $region37: #{tpu_custom_call.1} parent=1 // pred_fallthru
      _
    %v77 = vld [vmem:[#allocation3] sm:$0xff]
    %v78 = vld [vmem:[#allocation3 + $0x8] sm:$0xff]
    %v79 = vld [vmem:[#allocation6] sm:$0xff]
    %v80 = vld [vmem:[#allocation6 + $0x8] sm:$0xff]
    %v81 = vld [vmem:[#allocation8] sm:$0xff]
    %v82 = vld [vmem:[#allocation8 + $0x8] sm:$0xff]
    %v83 = vld [vmem:[#allocation9] sm:$0xff]
    %v84 = vld [vmem:[#allocation9 + $0x8] sm:$0xff]
    %v85 = vmul.f32 %v83, %v83
    %v86 = vmul.f32 %v84, %v84
    %vm87 = vcmask 261120
    %v88 = vsel %vm87, %v85, 0.0
    %89 = vadd.xlane.f32.xlu0 %v88
    %v90 = vpop.xlane.xlu0 %89
    %v91 = vsel %vm87, %v86, 0.0
    %92 = vadd.xlane.f32.xlu0 %v91
    %v93 = vpop.xlane.xlu0 %92
    %v94 = vmax.f32 %v90, 1e-24
    %v95 = vmax.f32 %v93, 1e-24
    %v96 = vrsqrt.pop %v94
    %v97 = vrsqrt.pop %v95
    %v98 = vmul.f32 %v83, %v96
    %v99 = vmul.f32 %v84, %v97
    %v100 = vmul.f32 %v77, %v98
    %v101 = vmul.f32 %v78, %v99
    %v102 = vsel %vm87, %v100, 0.0
    %103 = vadd.xlane.f32.xlu0 %v102
    %v104 = vpop.xlane.xlu0 %103
    %v105 = vsel %vm87, %v101, 0.0
    %106 = vadd.xlane.f32.xlu0 %v105
    %v107 = vpop.xlane.xlu0 %106
    %v108 = vmul.f32 %v104, %v98
    %v109 = vmul.f32 %v107, %v99
    %v110 = vsub.f32 %v77, %v108
    %v111 = vsub.f32 %v78, %v109
    %v112 = vmul.f32 %v79, %v98
    %v113 = vmul.f32 %v80, %v99
    %v114 = vsel %vm87, %v112, 0.0
    %115 = vadd.xlane.f32.xlu0 %v114
    %v116 = vpop.xlane.xlu0 %115
    %v117 = vsel %vm87, %v113, 0.0
    %118 = vadd.xlane.f32.xlu0 %v117
    %v119 = vpop.xlane.xlu0 %118
    %v120 = vmul.f32 %v116, %v98
    %v121 = vmul.f32 %v119, %v99
    %v122 = vsub.f32 %v79, %v120
    %v123 = vsub.f32 %v80, %v121
    %v124 = vadd.f32 %v110, %v81
    %v125 = vadd.f32 %v111, %v82
    %v126 = vsub.f32 %v124, %v122
    %v127 = vsub.f32 %v125, %v123
    %v128 = vmul.f32 %v126, %v126
    %v129 = vmul.f32 %v127, %v127
    %v130 = vsel %vm87, %v128, 0.0
    %131 = vadd.xlane.f32.xlu0 %v130
    %v132 = vpop.xlane.xlu0 %131
    %v133 = vsel %vm87, %v129, 0.0
    %134 = vadd.xlane.f32.xlu0 %v133
    %v135 = vpop.xlane.xlu0 %134
    %v136 = vrsqrt.pop %v132
    %v137 = vmul.f32 %v132, %v136
    %vm138 = vcmp.eq.f32.partialorder %v132, inf
    %v139 = vsel %vm138, %v132, %v137
    %vm140 = vcmp.eq.f32.partialorder %v132, 0.0
    %v141 = vand.u32 %v132, 2147483648
    %v142 = vsel %vm140, %v141, %v139
    %v143 = vrsqrt.pop %v135
    %v144 = vmul.f32 %v135, %v143
    %vm145 = vcmp.eq.f32.partialorder %v135, inf
    %v146 = vsel %vm145, %v135, %v144
    %vm147 = vcmp.eq.f32.partialorder %v135, 0.0
    %v148 = vand.u32 %v135, 2147483648
    %v149 = vsel %vm147, %v148, %v146
    %s150 = sld [smem:[#allocation2]]
    %v151 = vstv %s150
    %v152 = vadd.f32 %v151, %v142
    %v153 = vsub.f32 %v152, %v149
    %v154 = vmax.f32 %v153, 0.0
    %s155 = smul.u32 0, 8
    %v156 = vlaneseq
    %v157 = vshrl.u32 %v156, 7
    %v158 = vstv %s155
    %v159 = vadd.s32 %v158, %v157
    %vm160 = vcmp.lt.s32.totalorder %v159, 8
    %v161 = vsel %vm160, %v154, 0.0
    %vm162 = vcmask 7168
    %v163 = vsel %vm162, %v161, 0.0
    %164 = vadd.xlane.f32.xlu0 %v163
    %v165 = vpop.xlane.xlu0 %164
    %v166 = vrot.slane %v165, 4
    %v167 = vadd.f32 %v165, %v166
    %v168 = vrot.slane %v167, 2
    %v169 = vadd.f32 %v167, %v168
    %v170 = vrot.slane %v169, 1
    %v171 = vadd.f32 %v169, %v170
    %s172 = vtos %v171
    %v173 = vstv %s172
    %174 = vst [vmem:[#allocation11] sm:$0xff] %v173
    // Predicated region
    $region38: #{tpu_custom_call.1} parent=1 // pred_check
      _
    $region39: #{tpu_custom_call.1} parent=1 // pred_check_branch
      %176 = sbr.rel (0) target = $region41
    $region40: #{tpu_custom_call.1} parent=1 // pred_region
      %s178 = ssub.s32 128, 128
      %179 = vsyncadd [#allocation5], %s178
      %s181 = sshll.u32 [#allocation11], 4
      %s182 = int_to_ptr.vmem [resolvable:$true] %s181
      %184 = dma.vmem_to_hbm [thread:$0]  %s182, 128, %s5, [#allocation5]
    $region41: #{tpu_custom_call.1} parent=1 // pred_fallthru
      _
    // Predicated region
    $region42: #{tpu_custom_call.1} parent=1 // pred_check
      _
    $region43: #{tpu_custom_call.1} parent=1 // pred_check_branch
      %186 = sbr.rel (0) target = $region45
    $region44: #{tpu_custom_call.1} parent=1 // pred_region
      %187 = dma.done [#allocation5], 128
    $region45: #{tpu_custom_call.1} parent=1 // pred_fallthru
      _
    %188 = vsyncpa [#allocation4], 1
    %189 = vsyncpa [#allocation7], 1
    %190 = vsyncpa [#allocation10], 1
    %191 = vsyncpa [#allocation5], 1

</llo_original>
